<compile_context>
chip_gen: v5e
topology: v5e:2x2
jax: 0.10.0
libtpu: 0.0.40
codegen_flags: <defaults>
</compile_context>

<pallas_src>
import functools
import math

import jax
import jax.numpy as jnp
from jax import lax
from jax.experimental import pallas as pl
from jax.experimental.pallas import tpu as pltpu


def make_positional_encoding(d_model: int, max_len: int = 5000,
                             dtype=jnp.float32) -> jnp.ndarray:
    """Builds the (max_len, 1, d_model) pe buffer exactly as the PyTorch module.

    Build it once, at init, in the activation dtype so the forward pass never
    needs a cast/copy of the table.
    """
    position = jnp.arange(0, max_len, dtype=jnp.float32)[:, None]             # (max_len, 1)
    div_term = jnp.exp(
        jnp.arange(0, d_model, 2, dtype=jnp.float32) * (-math.log(10000.0) / d_model)
    )                                                                          # (d_model/2,)
    pe = jnp.zeros((max_len, d_model), dtype=jnp.float32)
    pe = pe.at[:, 0::2].set(jnp.sin(position * div_term))
    pe = pe.at[:, 1::2].set(jnp.cos(position * div_term))
    # unsqueeze(0).transpose(0, 1)  ->  (max_len, 1, d_model); match activation dtype.
    return pe[:, None, :].astype(dtype)


# ----------------------------------------------------------------------------
# Kernels
# ----------------------------------------------------------------------------

def _pe_add_kernel(x_ref, pe_ref, o_ref):
    # x_ref:  (TS, B, D) tile of the input
    # pe_ref: (TS, 1, D) tile of the pe table -> sublane-broadcast over B
    o_ref[...] = x_ref[...] + pe_ref[...]


def _pe_add_dropout_kernel(seed_ref, x_ref, pe_ref, o_ref, *,
                           rate: float, seq_tile: int):
    """Fused positional add + inverted dropout (training mode).

    Random bits come from a counter-based integer hash of the GLOBAL element
    index mixed with the seed, so the mask is identical regardless of the
    tile size chosen by the heuristic (and works in interpret mode, since it
    uses only plain vector integer ops -- no TPU hardware PRNG primitives).
    """
    ts, b, d = x_ref.shape
    shp = (ts, b, d)

    # Global element index of each entry in this tile.
    row0 = (pl.program_id(0) * seq_tile).astype(jnp.uint32)
    s_idx = lax.broadcasted_iota(jnp.int32, shp, 0).astype(jnp.uint32) + row0
    b_idx = lax.broadcasted_iota(jnp.int32, shp, 1).astype(jnp.uint32)
    d_idx = lax.broadcasted_iota(jnp.int32, shp, 2).astype(jnp.uint32)
    flat = (s_idx * jnp.uint32(b) + b_idx) * jnp.uint32(d) + d_idx

    # lowbias32-style hash, keyed by the seed (wraps naturally in uint32).
    seed = seed_ref[0].astype(jnp.uint32)
    h = flat + seed * jnp.uint32(0x9E3779B9)
    h = h ^ (h >> 16)
    h = h * jnp.uint32(0x21F0AAAD)
    h = h ^ (h >> 15)
    h = h * jnp.uint32(0x735A2D97)
    h = h ^ (h >> 15)

    threshold = jnp.uint32(min(int(rate * float(2 ** 32)), 2 ** 32 - 1))
    keep = h >= threshold                         # P(keep) = 1 - rate

    y = x_ref[...] + pe_ref[...]
    scale = jnp.asarray(1.0 / (1.0 - rate), dtype=y.dtype)
    o_ref[...] = jnp.where(keep, y * scale, jnp.zeros_like(y))


# ----------------------------------------------------------------------------
# Generation-aware tiling
# ----------------------------------------------------------------------------

def _tpu_hw_params():
    """Best-effort (physical VMEM bytes, #TensorCores per chip); safe fallbacks."""
    vmem = 64 << 20   # conservative default = v7x per-TC VMEM
    n_tc = 1
    try:
        info = pltpu.get_tpu_info()
        v = int(getattr(info, "vmem_capacity_bytes", 0) or 0)
        if v > 0:
            vmem = v
    except Exception:
        pass
    try:
        kind = jax.devices()[0].device_kind.lower()
        if "v7" in kind:   # 2 TensorCores per chip
            n_tc = 2
    except Exception:
        pass
    return vmem, n_tc


def _choose_seq_tile(S: int, B: int, D: int, itemsize: int, *,
                     vmem_tile_budget: int, n_tensorcores: int,
                     training_dropout: bool) -> int:
    """Pick how many sequence positions to process per grid step.

    VMEM accounting uses the padded (sublane, lane) footprint of each (B, D)
    slice, since B < 8 / D < 128 tiles are physically padded in VMEM.  The
    training path also budgets the uint32 random bits / mask / temporaries.
    """
    pad_b = -(-max(B, 1) // 8) * 8
    pad_d = -(-D // 128) * 128
    per_pos_io = pad_b * pad_d * itemsize        # one (1, B, D) slice of x or out
    per_pos_pe = 8 * pad_d * itemsize            # one (1, 1, D) slice of pe (8 sublanes)
    # Double-buffered x + out + pe per pipeline stage.
    per_pos_pipe = 2 * (2 * per_pos_io + per_pos_pe)
    # Dropout intermediates: u32 hash bits (4 B) + mask (~1 B) + f32 temps (~4 B).
    per_pos_scratch = pad_b * pad_d * (4 + 1 + 4) if training_dropout else 0

    target_x_tile_bytes = 8 << 20                # ~8 MiB of x per step amortizes the
                                                 # ~0.35 us per-step tax even at 3.2 TB/s
    ts = min(
        S,
        max(1, target_x_tile_bytes // per_pos_io),
        max(1, vmem_tile_budget // (per_pos_pipe + per_pos_scratch)),
    )
    ts = max(1, int(ts))

    steps = pl.cdiv(S, ts)
    if n_tensorcores > 1:
        # Megacore (v7x): keep both TensorCores busy and balanced -> even step
        # count >= 2 whenever the sequence allows it.
        if steps == 1 and S >= 2:
            steps = 2
        elif steps > 1 and steps % 2 != 0:
            steps += 1
        ts = int(pl.cdiv(S, steps))
    # Single-TC chips (v5e/v6e): no forced split -- a single big tile is best.
    return max(1, ts)


# ----------------------------------------------------------------------------
# Forward wrapper
# ----------------------------------------------------------------------------

def positional_encoding_forward(x: jnp.ndarray, pe: jnp.ndarray, *,
                                dropout_rate: float = 0.0,
                                training: bool = False,
                                dropout_seed: int = 0) -> jnp.ndarray:
    """x: (S, B, D);  pe: (max_len, 1, D) with max_len >= S.  Returns (S, B, D)."""
    S, B, D = x.shape
    assert pe.ndim == 3 and pe.shape[1] == 1 and pe.shape[2] == D
    assert pe.shape[0] >= S, "pe buffer shorter than the sequence"
    if pe.dtype != x.dtype:
        # Avoid this extra pass by building pe in the activation dtype at init.
        pe = pe.astype(x.dtype)

    apply_dropout = training and dropout_rate > 0.0
    if apply_dropout and dropout_rate >= 1.0:
        # nn.Dropout(p=1.0) zeroes everything.
        return jnp.zeros_like(x)

    itemsize = jnp.dtype(x.dtype).itemsize
    vmem_phys, n_tc = _tpu_hw_params()
    # ~3/4 of physical VMEM: 96 MiB on 128-MiB v5e/v6e, 48 MiB on 64-MiB v7x.
    vmem_limit = int(min(max(vmem_phys * 3 // 4, 32 << 20), 100 << 20))
    vmem_tile_budget = vmem_limit // 2

    ts = _choose_seq_tile(S, B, D, itemsize,
                          vmem_tile_budget=vmem_tile_budget,
                          n_tensorcores=n_tc,
                          training_dropout=apply_dropout)
    grid = (pl.cdiv(S, ts),)

    # index_maps take (*grid_ids, *scalar_prefetch_refs); `*_` absorbs the latter.
    # pe is passed UNSLICED: only blocks [0, ceil(S/ts)) of its first axis are
    # ever fetched, which mirrors pe[:S] with zero wrapper-side data movement.
    x_spec = pl.BlockSpec((ts, B, D), lambda i, *_: (i, 0, 0))
    pe_spec = pl.BlockSpec((ts, 1, D), lambda i, *_: (i, 0, 0))
    out_spec = pl.BlockSpec((ts, B, D), lambda i, *_: (i, 0, 0))

    cost = pl.CostEstimate(
        flops=S * B * D,
        transcendentals=0,
        bytes_accessed=2 * S * B * D * itemsize + S * D * itemsize,
    )
    compiler_params = pltpu.CompilerParams(
        dimension_semantics=("parallel",),
        vmem_limit_bytes=vmem_limit,
    )
    out_shape = jax.ShapeDtypeStruct((S, B, D), x.dtype)

    if not apply_dropout:
        # Eval mode: dropout is the identity.
        return pl.pallas_call(
            _pe_add_kernel,
            out_shape=out_shape,
            grid_spec=pltpu.PrefetchScalarGridSpec(
                num_scalar_prefetch=0,
                grid=grid,
                in_specs=[x_spec, pe_spec],
                out_specs=out_spec,
            ),
            compiler_params=compiler_params,
            cost_estimate=cost,
        )(x, pe)

    # Training mode: fused dropout (saves a full extra HBM read+write of x).
    seed = jnp.asarray([int(dropout_seed)], dtype=jnp.int32)
    kernel = functools.partial(_pe_add_dropout_kernel,
                               rate=float(dropout_rate), seq_tile=ts)
    return pl.pallas_call(
        kernel,
        out_shape=out_shape,
        grid_spec=pltpu.PrefetchScalarGridSpec(
            num_scalar_prefetch=1,
            grid=grid,
            in_specs=[x_spec, pe_spec],
            out_specs=out_spec,
        ),
        compiler_params=compiler_params,
        cost_estimate=cost,
    )(seed, x, pe)


if __name__ == "__main__":
    # Small shapes consistent with the module: seq=8, batch=2, d_model=32.
    S, B, D = 8, 2, 32
    max_len = 64  # small synthetic buffer (module default is 5000)

    key = jax.random.PRNGKey(0)
    x = jax.random.normal(key, (S, B, D), dtype=jnp.float32)
    pe = make_positional_encoding(D, max_len, dtype=x.dtype)

    # --- Eval mode (dropout = identity): exact reference check. ---
    y = jax.block_until_ready(positional_encoding_forward(x, pe))
    y_ref = x + pe[:S]
    assert y.shape == (S, B, D)
    assert jnp.allclose(y, y_ref, atol=1e-6), "mismatch vs reference (eval mode)"

    # --- Training mode (fused in-kernel dropout): structural checks. ---
    rate = 0.5
    yt = jax.block_until_ready(
        positional_encoding_forward(x, pe, dropout_rate=rate, training=True,
                                    dropout_seed=123)
    )
    assert yt.shape == (S, B, D)
    assert bool(jnp.all(jnp.isfinite(yt)))
    kept = yt != 0  # (kept elements whose value is exactly 0 are vanishingly rare here)
    # Kept entries must equal (x + pe) / (1 - rate) exactly; dropped entries are 0.
    assert jnp.allclose(
        jnp.where(kept, yt, 0.0),
        jnp.where(kept, y_ref / (1.0 - rate), 0.0),
        atol=1e-5,
    ), "mismatch vs reference (training mode, kept elements)"
    frac_kept = float(jnp.mean(kept.astype(jnp.float32)))
    assert 0.2 < frac_kept < 0.8, f"implausible dropout keep fraction {frac_kept}"

    print("KERNEL_OK")
</pallas_src>

<mosaic_0001>
module attributes {stable_mosaic.version = 11 : i64} {
  func.func @_pe_add_kernel(%arg0: i32, %arg1: memref<8x2x32xf32, #tpu.memory_space<vmem>>, %arg2: memref<8x1x32xf32, #tpu.memory_space<vmem>>, %arg3: memref<8x2x32xf32, #tpu.memory_space<vmem>>) attributes {dimension_semantics = [#tpu.dimension_semantics<parallel>], iteration_bounds = array<i64: 1>, scalar_prefetch = 0 : i64, scratch_operands = 0 : i64, tpu.core_type = #tpu.core_type<tc>, window_params = [{transform_indices = @transform_0, window_bounds = array<i64: 8, 2, 32>}, {transform_indices = @transform_1, window_bounds = array<i64: 8, 1, 32>}, {transform_indices = @transform_2, window_bounds = array<i64: 8, 2, 32>}]} {
    %c0 = arith.constant 0 : index
    %c0_0 = arith.constant 0 : index
    %c0_1 = arith.constant 0 : index
    %0 = vector.load %arg1[%c0, %c0_0, %c0_1] : memref<8x2x32xf32, #tpu.memory_space<vmem>>, vector<8x2x32xf32>
    %c0_2 = arith.constant 0 : index
    %c0_3 = arith.constant 0 : index
    %c0_4 = arith.constant 0 : index
    %1 = vector.load %arg2[%c0_2, %c0_3, %c0_4] : memref<8x1x32xf32, #tpu.memory_space<vmem>>, vector<8x1x32xf32>
    %2 = vector.broadcast %1 : vector<8x1x32xf32> to vector<8x2x32xf32>
    %3 = arith.addf %0, %2 : vector<8x2x32xf32>
    %c0_5 = arith.constant 0 : index
    %c0_6 = arith.constant 0 : index
    %c0_7 = arith.constant 0 : index
    %4 = vector.load %arg3[%c0_5, %c0_6, %c0_7] : memref<8x2x32xf32, #tpu.memory_space<vmem>>, vector<8x2x32xf32>
    tpu.vector_store %arg3[%c0_5, %c0_6, %c0_7], %3 {strides = array<i32>} : memref<8x2x32xf32, #tpu.memory_space<vmem>>, vector<8x2x32xf32>,
    return
  }
  func.func @transform_0(%arg0: i32) -> (i32, i32, i32) {
    %c0_i32 = arith.constant 0 : i32
    %c0_i32_0 = arith.constant 0 : i32
    %c0_i32_1 = arith.constant 0 : i32
    return %arg0, %c0_i32, %c0_i32_0 : i32, i32, i32
  }
  func.func @transform_1(%arg0: i32) -> (i32, i32, i32) {
    %c0_i32 = arith.constant 0 : i32
    %c0_i32_0 = arith.constant 0 : i32
    %c0_i32_1 = arith.constant 0 : i32
    return %arg0, %c0_i32, %c0_i32_0 : i32, i32, i32
  }
  func.func @transform_2(%arg0: i32) -> (i32, i32, i32) {
    %c0_i32 = arith.constant 0 : i32
    %c0_i32_0 = arith.constant 0 : i32
    %c0_i32_1 = arith.constant 0 : i32
    return %arg0, %c0_i32, %c0_i32_0 : i32, i32, i32
  }
}

</mosaic_0001>

<llo_original>
// kernel: tpu_custom_call.1
$region0: #{tpu_custom_call.1}
  #allocation0 [shape = 'u32[]', space=smem, size = 0x4, offset = 0x4, fixed_abs, tag = 'smem constant byte address 0x4 - core index']
  #allocation1 [shape = 'u32[72,128]{1,0:T(1,128)}', space=vmem, size = 0x9000, scoped, tag = 'internal scratch']
  %s0 = inlined_call_operand.vmem [shape: f32[8,2,32], index: 0, kind: input, shape index: {}]
  %s1 = inlined_call_operand.vmem [shape: f32[64,1,32], index: 1, kind: input, shape index: {}]
  %s2 = inlined_call_operand.hbm [shape: f32[8,2,32], index: 2, kind: output, shape index: {}]
  %s3 = sld [smem:[#allocation0]]
  $region18: #{tpu_custom_call.1} parent=0
    _
  %s5 = ssub.s32 1, %s3
  %s6 = scalar_select 0, %s5, %s3
  $region1: #{tpu_custom_call.1} parent=0
    #allocation2 [shape = 'u8[8192]{0}', space=vmem, size = 0x2000, scoped, tag = 'output window, operand 0, single buffered']
    #allocation3 [shape = 's32[1]{0}', space=sflag, size = 0x4, scoped, tag = 'scoped memory for tpu_custom_call.1']
    %7 = vsyncpa [#allocation3], 0
    // Predicated region
    $region2: #{tpu_custom_call.1} parent=1 // pred_check
      _
    $region3: #{tpu_custom_call.1} parent=1 // pred_check_branch
      %9 = sbr.rel (0) target = $region5
    $region4: #{tpu_custom_call.1} parent=1 // pred_region
      _
    $region5: #{tpu_custom_call.1} parent=1 // pred_fallthru
      _
    // Predicated region
    $region6: #{tpu_custom_call.1} parent=1 // pred_check
      _
    $region7: #{tpu_custom_call.1} parent=1 // pred_check_branch
      %11 = sbr.rel (0) target = $region9
    $region8: #{tpu_custom_call.1} parent=1 // pred_region
      _
    $region9: #{tpu_custom_call.1} parent=1 // pred_fallthru
      _
    %v12 = vld [vmem:[%s0] sm:$0x3]
    %v13 = vld [vmem:[%s0 + $0x2] sm:$0x3]
    %v14 = vld [vmem:[%s0 + $0x4] sm:$0x3]
    %v15 = vld [vmem:[%s0 + $0x6] sm:$0x3]
    %v16 = vld [vmem:[%s0 + $0x8] sm:$0x3]
    %v17 = vld [vmem:[%s0 + $0xa] sm:$0x3]
    %v18 = vld [vmem:[%s0 + $0xc] sm:$0x3]
    %v19 = vld [vmem:[%s0 + $0xe] sm:$0x3]
    %v20 = vld [vmem:[%s1] sm:$0x1]
    %v21 = vld [vmem:[%s1 + $0x1] sm:$0x1]
    %v22 = vld [vmem:[%s1 + $0x2] sm:$0x1]
    %v23 = vld [vmem:[%s1 + $0x3] sm:$0x1]
    %v24 = vld [vmem:[%s1 + $0x4] sm:$0x1]
    %v25 = vld [vmem:[%s1 + $0x5] sm:$0x1]
    %v26 = vld [vmem:[%s1 + $0x6] sm:$0x1]
    %v27 = vld [vmem:[%s1 + $0x7] sm:$0x1]
    %v36 = vperm.slane %v20, 0
    %v37 = vperm.slane %v21, 0
    %v38 = vperm.slane %v22, 0
    %v39 = vperm.slane %v23, 0
    %v40 = vperm.slane %v24, 0
    %v41 = vperm.slane %v25, 0
    %v42 = vperm.slane %v26, 0
    %v43 = vperm.slane %v27, 0
    %v52 = vadd.f32 %v12, %v36
    %v53 = vadd.f32 %v13, %v37
    %v54 = vadd.f32 %v14, %v38
    %v55 = vadd.f32 %v15, %v39
    %v56 = vadd.f32 %v16, %v40
    %v57 = vadd.f32 %v17, %v41
    %v58 = vadd.f32 %v18, %v42
    %v59 = vadd.f32 %v19, %v43
    %vm60 = vcmask 254976
    %61 = vst.msk [vmem:[#allocation2] sm:$0x3] %vm60, %v52
    %62 = vst.msk [vmem:[#allocation2 + $0x2] sm:$0x3] %vm60, %v53
    %63 = vst.msk [vmem:[#allocation2 + $0x4] sm:$0x3] %vm60, %v54
    %64 = vst.msk [vmem:[#allocation2 + $0x6] sm:$0x3] %vm60, %v55
    %65 = vst.msk [vmem:[#allocation2 + $0x8] sm:$0x3] %vm60, %v56
    %66 = vst.msk [vmem:[#allocation2 + $0xa] sm:$0x3] %vm60, %v57
    %67 = vst.msk [vmem:[#allocation2 + $0xc] sm:$0x3] %vm60, %v58
    %68 = vst.msk [vmem:[#allocation2 + $0xe] sm:$0x3] %vm60, %v59
    // Predicated region
    $region10: #{tpu_custom_call.1} parent=1 // pred_check
      _
    $region11: #{tpu_custom_call.1} parent=1 // pred_check_branch
      %70 = sbr.rel (0) target = $region13
    $region12: #{tpu_custom_call.1} parent=1 // pred_region
      %72 = vsyncadd [#allocation3], 0
      %s73 = sshll.u32 [#allocation2], 4
      %s74 = int_to_ptr.vmem [resolvable:$true] %s73
      %s75 = sshll.u32 %s2, 4
      %s76 = int_to_ptr.hbm [resolvable:$true] %s75
      %81 = dma.vmem_to_hbm [thread:$0]  %s74, 256, %s76, [#allocation3], 32, 32, 2
    $region13: #{tpu_custom_call.1} parent=1 // pred_fallthru
      _
    // Predicated region
    $region14: #{tpu_custom_call.1} parent=1 // pred_check
      _
    $region15: #{tpu_custom_call.1} parent=1 // pred_check_branch
      %83 = sbr.rel (0) target = $region17
    $region16: #{tpu_custom_call.1} parent=1 // pred_region
      %85 = dma.done [#allocation3], 256
    $region17: #{tpu_custom_call.1} parent=1 // pred_fallthru
      _
    %86 = vsyncpa [#allocation3], 1

</llo_original>
